<compile_context>
chip_gen: v5e
topology: v5e:2x2
jax: 0.10.0
libtpu: 0.0.40
codegen_flags: <defaults>
</compile_context>

<pallas_src>
import jax
import jax.numpy as jnp
import numpy as np
from jax.experimental import pallas as pl
from jax.experimental.pallas import tpu as pltpu

BN_EPS = 1e-5   # PyTorch BatchNorm1d default


def _round_up(x, m):
    return (x + m - 1) // m * m


def make_mlp_kernel(relu_first: bool, n_batch: int):
    """Kernel refs per layer-grid step l:
         x_ref   : (N, C_pad)   bf16  (resident, used only at l==0)
         w_ref   : (C_pad, C_pad) bf16  (this layer's weight, streamed)
         vec_ref : (3, C_pad)   f32   rows = [bias_l, gamma_{l-1}, beta_{l-1}]
         out_ref : (N, C_pad)   f32   resident activation / final output
    """
    # NOTE: inv_n is baked from the true batch size; no batch-row padding is
    # introduced anywhere, so BN stats are exact.
    inv_n = 1.0 / float(n_batch)

    def kernel(x_ref, w_ref, vec_ref, out_ref):
        l = pl.program_id(0)
        w = w_ref[...]                      # (C_pad, C_pad) bf16
        b = vec_ref[0:1, :]                 # (1, C_pad) f32

        @pl.when(l == 0)
        def _():
            # First Linear: x (already bf16) @ W0 + b0
            out_ref[...] = jnp.dot(x_ref[...], w,
                                   preferred_element_type=jnp.float32) + b

        @pl.when(l > 0)
        def _():
            x = out_ref[...]                # previous layer's activation, f32
            gamma = vec_ref[1:2, :]         # (1, C_pad) f32
            beta = vec_ref[2:3, :]          # (1, C_pad) f32

            if relu_first:
                x = jnp.maximum(x, 0.0)

            # BatchNorm1d(track_running_stats=False): batch stats, biased
            # variance, two-pass formula folded into per-channel scale/shift.
            mean = jnp.sum(x, axis=0, keepdims=True) * inv_n
            d = x - mean
            var = jnp.sum(d * d, axis=0, keepdims=True) * inv_n
            scale = gamma * jax.lax.rsqrt(var + BN_EPS)
            x = d * scale + beta

            if not relu_first:
                x = jnp.maximum(x, 0.0)

            # Dropout: identity (eval mode / p=0.0) -- see TODO in header.
            out_ref[...] = jnp.dot(x.astype(jnp.bfloat16), w,
                                   preferred_element_type=jnp.float32) + b

    return kernel


def pack_params(params, channel_list):
    """Pack per-layer params into two lane-padded stacks (done once).

    w_stack   : (n_layers, C_pad, C_pad) bf16
    vec_stack : (n_layers, 3, C_pad)     f32   rows = [bias, gamma, beta]
    """
    n_layers = len(channel_list) - 1
    max_c = max(channel_list)
    # 256-align K/N when real channels exceed 128 (v6e/v7x MXU = 2x256^2);
    # keep 128 alignment for small layers (don't inflate tiny matmuls 8x).
    align = 256 if max_c > 128 else 128
    c_pad = _round_up(max_c, align)

    w_stack = np.zeros((n_layers, c_pad, c_pad), np.float32)
    vec_stack = np.zeros((n_layers, 3, c_pad), np.float32)
    for l in range(n_layers):
        cin, cout = channel_list[l], channel_list[l + 1]
        w_stack[l, :cin, :cout] = np.asarray(params["w"][l])
        vec_stack[l, 0, :cout] = np.asarray(params["b"][l]).reshape(-1)
        if l >= 1:
            # BN parameters of norms[l-1] act on this layer's INPUT channels.
            vec_stack[l, 1, :cin] = np.asarray(params["gamma"][l - 1]).reshape(-1)
            vec_stack[l, 2, :cin] = np.asarray(params["beta"][l - 1]).reshape(-1)

    # Weights stored bf16 (MXU-native, halves weight DMA); vectors stay f32.
    return (jnp.asarray(w_stack, jnp.bfloat16),
            jnp.asarray(vec_stack, jnp.float32),
            c_pad)


def mlp_forward(x, w_stack, vec_stack, channel_list, relu_first=False):
    n_layers = len(channel_list) - 1
    n = x.shape[0]
    c_pad = w_stack.shape[-1]

    # Zero-pad input features to lane width, pre-cast to bf16 (the dot LHS is
    # bf16 anyway); pad channels stay exactly 0 through the whole network.
    x_p = jnp.zeros((n, c_pad), jnp.bfloat16).at[:, :channel_list[0]].set(
        x.astype(jnp.bfloat16))

    kernel = make_mlp_kernel(relu_first, n)

    # Explicit VMEM budget from actual buffer sizes (v7x physical VMEM = 64 MiB).
    budget = (2 * c_pad * c_pad * 2      # per-layer bf16 weight tile, 2 buffers
              + 2 * 3 * c_pad * 4        # per-layer vec tile, 2 buffers
              + 2 * n * c_pad * 2        # bf16 input block
              + 2 * n * c_pad * 4        # f32 output/activation block
              + (2 << 20))               # compiler scratch headroom
    vmem_limit = int(min(max(budget, 32 << 20), 64 << 20))

    out_p = pl.pallas_call(
        kernel,
        out_shape=jax.ShapeDtypeStruct((n, c_pad), jnp.float32),
        grid_spec=pltpu.PrefetchScalarGridSpec(
            num_scalar_prefetch=0,
            grid=(n_layers,),
            in_specs=[
                # Input: resident across the layer axis.
                pl.BlockSpec((n, c_pad), lambda l: (0, 0)),
                # Per-layer weight tile: streamed + double-buffered by Pallas.
                pl.BlockSpec((None, c_pad, c_pad), lambda l: (l, 0, 0)),
                # Per-layer [bias, gamma, beta] block.
                pl.BlockSpec((None, 3, c_pad), lambda l: (l, 0, 0)),
            ],
            # Constant index -> output block resident across the layer axis;
            # it doubles as the activation carry (accumulator pattern).
            out_specs=pl.BlockSpec((n, c_pad), lambda l: (0, 0)),
        ),
        compiler_params=pltpu.CompilerParams(
            dimension_semantics=("arbitrary",),   # layers are sequential
            vmem_limit_bytes=vmem_limit,
        ),
    )(x_p, w_stack, vec_stack)

    return out_p[:, :channel_list[-1]]


def mlp_reference(x, params, channel_list, relu_first=False):
    """Pure-JAX reference mirroring the PyTorch forward (eval / p=0 dropout),
    with the same bf16-input / f32-accumulate matmul precision as the kernel."""
    n_layers = len(channel_list) - 1

    def bdot(a, w):
        return jnp.dot(a.astype(jnp.bfloat16), w.astype(jnp.bfloat16),
                       preferred_element_type=jnp.float32)

    x = bdot(x, params["w"][0]) + params["b"][0]
    for i in range(1, n_layers):
        g = params["gamma"][i - 1]
        bt = params["beta"][i - 1]
        if relu_first:
            x = jnp.maximum(x, 0.0)
        mean = jnp.mean(x, axis=0, keepdims=True)
        var = jnp.mean((x - mean) ** 2, axis=0, keepdims=True)
        x = (x - mean) / jnp.sqrt(var + BN_EPS) * g + bt
        if not relu_first:
            x = jnp.maximum(x, 0.0)
        x = bdot(x, params["w"][i]) + params["b"][i]
    return x


def init_params(key, channel_list):
    """Deterministic init (Linear-style uniform bound 1/sqrt(fan_in); BN gamma=1, beta=0)."""
    n_layers = len(channel_list) - 1
    ws, bs, gs, betas = [], [], [], []
    for i in range(n_layers):
        key, k1, k2 = jax.random.split(key, 3)
        fan_in, fan_out = channel_list[i], channel_list[i + 1]
        bound = 1.0 / float(np.sqrt(fan_in))
        ws.append(jax.random.uniform(k1, (fan_in, fan_out), jnp.float32, -bound, bound))
        bs.append(jax.random.uniform(k2, (1, fan_out), jnp.float32, -bound, bound))
    for i in range(1, n_layers):
        c = channel_list[i]
        gs.append(jnp.ones((1, c), jnp.float32))
        betas.append(jnp.zeros((1, c), jnp.float32))
    return {"w": ws, "b": bs, "gamma": gs, "beta": betas}


if __name__ == "__main__":
    channel_list = [16, 32, 32, 8]   # MLP(16, 32, 32, 8)
    batch = 8
    relu_first = False               # PyTorch default

    key = jax.random.PRNGKey(0)
    key, kx, kp = jax.random.split(key, 3)
    x = jax.random.normal(kx, (batch, channel_list[0]), dtype=jnp.float32)
    params = init_params(kp, channel_list)

    w_stack, vec_stack, _ = pack_params(params, channel_list)

    out = mlp_forward(x, w_stack, vec_stack, channel_list, relu_first=relu_first)
    out = jax.block_until_ready(out)

    ref = mlp_reference(x, params, channel_list, relu_first=relu_first)
    ref = jax.block_until_ready(ref)

    assert out.shape == (batch, channel_list[-1]), out.shape
    np.testing.assert_allclose(np.asarray(out), np.asarray(ref), rtol=1e-3, atol=1e-3)

    print("KERNEL_OK")
</pallas_src>

<mosaic_0001>
module attributes {stable_mosaic.version = 11 : i64} {
  func.func @kernel(%arg0: i32, %arg1: memref<8x128xbf16, #tpu.memory_space<vmem>>, %arg2: memref<1x128x128xbf16, #tpu.memory_space<vmem>>, %arg3: memref<1x3x128xf32, #tpu.memory_space<vmem>>, %arg4: memref<8x128xf32, #tpu.memory_space<vmem>>) attributes {dimension_semantics = [#tpu.dimension_semantics<arbitrary>], iteration_bounds = array<i64: 3>, scalar_prefetch = 0 : i64, scratch_operands = 0 : i64, tpu.core_type = #tpu.core_type<tc>, window_params = [{pipeline_mode = #tpu.pipeline_mode<synchronous>, transform_indices = @transform_0, window_bounds = array<i64: 8, 128>}, {transform_indices = @transform_1, window_bounds = array<i64: 1, 128, 128>}, {transform_indices = @transform_2, window_bounds = array<i64: 1, 3, 128>}, {pipeline_mode = #tpu.pipeline_mode<synchronous>, transform_indices = @transform_3, window_bounds = array<i64: 8, 128>}]} {
    %c0 = arith.constant 0 : index
    %c0_0 = arith.constant 0 : index
    %c0_1 = arith.constant 0 : index
    %0 = vector.load %arg2[%c0, %c0_0, %c0_1] : memref<1x128x128xbf16, #tpu.memory_space<vmem>>, vector<1x128x128xbf16>
    %1 = vector.shape_cast %0 : vector<1x128x128xbf16> to vector<128x128xbf16>
    %c0_2 = arith.constant 0 : index
    %c0_3 = arith.constant 0 : index
    %c0_4 = arith.constant 0 : index
    %2 = vector.load %arg3[%c0_2, %c0_3, %c0_4] : memref<1x3x128xf32, #tpu.memory_space<vmem>>, vector<1x1x128xf32>
    %3 = vector.shape_cast %2 : vector<1x1x128xf32> to vector<1x128xf32>
    %c0_i32 = arith.constant 0 : i32
    %4 = arith.cmpi eq, %arg0, %c0_i32 : i32
    %5 = arith.extui %4 : i1 to i32
    %c0_i32_5 = arith.constant 0 : i32
    %6 = arith.cmpi ne, %5, %c0_i32_5 : i32
    scf.if %6 {
      %c0_8 = arith.constant 0 : index
      %c0_9 = arith.constant 0 : index
      %10 = vector.load %arg1[%c0_8, %c0_9] : memref<8x128xbf16, #tpu.memory_space<vmem>>, vector<8x128xbf16>
      %cst = arith.constant dense<0.000000e+00> : vector<8x128xf32>
      %11 = tpu.matmul %10, %1, %cst {dimension_numbers = #tpu.dot_dimension_numbers<[1], [0], [0], [1], [0, 0, 1, 1], [], []>} : vector<8x128xbf16>, vector<128x128xbf16>, vector<8x128xf32> -> vector<8x128xf32>
      %12 = vector.broadcast %3 : vector<1x128xf32> to vector<8x128xf32>
      %13 = arith.addf %11, %12 : vector<8x128xf32>
      %c0_10 = arith.constant 0 : index
      %c0_11 = arith.constant 0 : index
      %14 = vector.load %arg4[%c0_10, %c0_11] : memref<8x128xf32, #tpu.memory_space<vmem>>, vector<8x128xf32>
      tpu.vector_store %arg4[%c0_10, %c0_11], %13 {strides = array<i32>} : memref<8x128xf32, #tpu.memory_space<vmem>>, vector<8x128xf32>,
    } else {
    }
    %c0_i32_6 = arith.constant 0 : i32
    %7 = arith.cmpi sgt, %arg0, %c0_i32_6 : i32
    %8 = arith.extui %7 : i1 to i32
    %c0_i32_7 = arith.constant 0 : i32
    %9 = arith.cmpi ne, %8, %c0_i32_7 : i32
    scf.if %9 {
      %c0_8 = arith.constant 0 : index
      %c0_9 = arith.constant 0 : index
      %10 = vector.load %arg4[%c0_8, %c0_9] : memref<8x128xf32, #tpu.memory_space<vmem>>, vector<8x128xf32>
      %c0_10 = arith.constant 0 : index
      %c1 = arith.constant 1 : index
      %c0_11 = arith.constant 0 : index
      %11 = vector.load %arg3[%c0_10, %c1, %c0_11] : memref<1x3x128xf32, #tpu.memory_space<vmem>>, vector<1x1x128xf32>
      %12 = vector.shape_cast %11 : vector<1x1x128xf32> to vector<1x128xf32>
      %c0_12 = arith.constant 0 : index
      %c2 = arith.constant 2 : index
      %c0_13 = arith.constant 0 : index
      %13 = vector.load %arg3[%c0_12, %c2, %c0_13] : memref<1x3x128xf32, #tpu.memory_space<vmem>>, vector<1x1x128xf32>
      %14 = vector.shape_cast %13 : vector<1x1x128xf32> to vector<1x128xf32>
      %cst = arith.constant dense<0.000000e+00> : vector<128xf32>
      %15 = vector.multi_reduction <add>, %10, %cst [0] : vector<8x128xf32> to vector<128xf32>
      %16 = vector.shape_cast %15 : vector<128xf32> to vector<1x128xf32>
      %cst_14 = arith.constant 1.250000e-01 : f32
      %17 = vector.broadcast %cst_14 : f32 to vector<1x128xf32>
      %18 = arith.mulf %16, %17 : vector<1x128xf32>
      %19 = vector.broadcast %18 : vector<1x128xf32> to vector<8x128xf32>
      %20 = arith.subf %10, %19 : vector<8x128xf32>
      %21 = arith.mulf %20, %20 : vector<8x128xf32>
      %cst_15 = arith.constant dense<0.000000e+00> : vector<128xf32>
      %22 = vector.multi_reduction <add>, %21, %cst_15 [0] : vector<8x128xf32> to vector<128xf32>
      %23 = vector.shape_cast %22 : vector<128xf32> to vector<1x128xf32>
      %cst_16 = arith.constant 1.250000e-01 : f32
      %24 = vector.broadcast %cst_16 : f32 to vector<1x128xf32>
      %25 = arith.mulf %23, %24 : vector<1x128xf32>
      %cst_17 = arith.constant 9.99999974E-6 : f32
      %26 = vector.broadcast %cst_17 : f32 to vector<1x128xf32>
      %27 = arith.addf %25, %26 : vector<1x128xf32>
      %28 = math.rsqrt %27 : vector<1x128xf32>
      %29 = arith.mulf %12, %28 : vector<1x128xf32>
      %30 = vector.broadcast %29 : vector<1x128xf32> to vector<8x128xf32>
      %31 = arith.mulf %20, %30 : vector<8x128xf32>
      %32 = vector.broadcast %14 : vector<1x128xf32> to vector<8x128xf32>
      %33 = arith.addf %31, %32 : vector<8x128xf32>
      %cst_18 = arith.constant 0.000000e+00 : f32
      %34 = vector.broadcast %cst_18 : f32 to vector<8x128xf32>
      %35 = arith.maximumf %33, %34 : vector<8x128xf32>
      %36 = arith.truncf %35 : vector<8x128xf32> to vector<8x128xbf16>
      %cst_19 = arith.constant dense<0.000000e+00> : vector<8x128xf32>
      %37 = tpu.matmul %36, %1, %cst_19 {dimension_numbers = #tpu.dot_dimension_numbers<[1], [0], [0], [1], [0, 0, 1, 1], [], []>} : vector<8x128xbf16>, vector<128x128xbf16>, vector<8x128xf32> -> vector<8x128xf32>
      %38 = vector.broadcast %3 : vector<1x128xf32> to vector<8x128xf32>
      %39 = arith.addf %37, %38 : vector<8x128xf32>
      %c0_20 = arith.constant 0 : index
      %c0_21 = arith.constant 0 : index
      %40 = vector.load %arg4[%c0_20, %c0_21] : memref<8x128xf32, #tpu.memory_space<vmem>>, vector<8x128xf32>
      tpu.vector_store %arg4[%c0_20, %c0_21], %39 {strides = array<i32>} : memref<8x128xf32, #tpu.memory_space<vmem>>, vector<8x128xf32>,
    } else {
    }
    return
  }
  func.func @transform_0(%arg0: i32) -> (i32, i32) {
    %c0_i32 = arith.constant 0 : i32
    %c0_i32_0 = arith.constant 0 : i32
    %c0_i32_1 = arith.constant 0 : i32
    return %c0_i32, %c0_i32_0 : i32, i32
  }
  func.func @transform_1(%arg0: i32) -> (i32, i32, i32) {
    %c0_i32 = arith.constant 0 : i32
    %c0_i32_0 = arith.constant 0 : i32
    %c0_i32_1 = arith.constant 0 : i32
    return %arg0, %c0_i32, %c0_i32_0 : i32, i32, i32
  }
  func.func @transform_2(%arg0: i32) -> (i32, i32, i32) {
    %c0_i32 = arith.constant 0 : i32
    %c0_i32_0 = arith.constant 0 : i32
    %c0_i32_1 = arith.constant 0 : i32
    return %arg0, %c0_i32, %c0_i32_0 : i32, i32, i32
  }
  func.func @transform_3(%arg0: i32) -> (i32, i32) {
    %c0_i32 = arith.constant 0 : i32
    %c0_i32_0 = arith.constant 0 : i32
    %c0_i32_1 = arith.constant 0 : i32
    return %c0_i32, %c0_i32_0 : i32, i32
  }
}

</mosaic_0001>

<llo_original>
// kernel: tpu_custom_call.1
$region0: #{tpu_custom_call.1}
  #allocation0 [shape = 'u32[]', space=smem, size = 0x4, offset = 0x4, fixed_abs, tag = 'smem constant byte address 0x4 - core index']
  #allocation1 [shape = 'u32[72,128]{1,0:T(1,128)}', space=vmem, size = 0x9000, scoped, tag = 'internal scratch']
  %s0 = inlined_call_operand.hbm [shape: bf16[8,128], index: 0, kind: input, shape index: {}]
  %s1 = inlined_call_operand.hbm [shape: bf16[3,128,128], index: 1, kind: input, shape index: {}]
  %s2 = inlined_call_operand.hbm [shape: f32[3,3,128], index: 2, kind: input, shape index: {}]
  %s3 = inlined_call_operand.hbm [shape: f32[8,128], index: 3, kind: output, shape index: {}]
  %s4 = sld [smem:[#allocation0]]
  $region65: #{tpu_custom_call.1} parent=0
    _
  %s6 = ssub.s32 1, %s4
  %s7 = scalar_select 0, %s6, %s4
  $region1: #{tpu_custom_call.1} parent=0
    #allocation2 [shape = 'u8[2048]{0}', space=vmem, size = 0x800, scoped, tag = 'input window, operand 0, single buffered']
    #allocation3 [shape = 's32[2]{0}', space=sflag, size = 0x8, scoped, tag = 'scoped memory for tpu_custom_call.1']
    #allocation4 [shape = 's32[2]{0}', space=sflag, size = 0x8, scoped, tag = 'scoped memory for tpu_custom_call.1']
    #allocation5 [shape = 'u8[65536]{0}', space=vmem, size = 0x10000, scoped, tag = 'input window, operand 1']
    #allocation6 [shape = 's32[2]{0}', space=sflag, size = 0x8, scoped, tag = 'scoped memory for tpu_custom_call.1']
    #allocation7 [shape = 'u8[4096]{0}', space=vmem, size = 0x1000, scoped, tag = 'input window, operand 2']
    #allocation8 [shape = 'u8[4096]{0}', space=vmem, size = 0x1000, scoped, tag = 'output window, operand 0, single buffered']
    %8 = vsyncpa [#allocation3], 0
    %9 = vsyncpa [#allocation6], 0
    %s10 = scalar_lea.sflag [#allocation6], 1
    %11 = vsyncpa %s10, 0
    %12 = vsyncpa [#allocation4], 0
    loop: start=0, step=1, limit=5
    $region2: #{tpu_custom_call.1} parent=1 // loop_pre_header
      _
    $region3: #{tpu_custom_call.1} parent=1 // loop_header
      %s14 = sphi 0, %s18
      %p15 = scmp.ge.s32.totalorder %s14, 5
      %s22 = sphi 0, %s22
      %s24 = sphi 0, %s22
      %s25 = sphi 0, %s24
      %s39 = sphi 0, %s25
      %s45 = sphi 0, %s47
      %s48 = sphi 0, %s45
      %s49 = sphi 0, %s48
      %s65 = sphi 0, %s49
      %s71 = sphi 0, %s73
      %s74 = sphi 0, %s71
      %s75 = sphi 0, %s74
      %s91 = sphi 0, %s75
      %s95 = sphi 0, %s95
      %s97 = sphi 0, %s95
      %s98 = sphi 0, %s97
      %s112 = sphi 0, %s98
    $region4: #{tpu_custom_call.1} parent=1 // loop_header_branch
      %17 = sbr.rel (%p15) target = $region8
    $region5: #{tpu_custom_call.1} parent=1 // loop_body
      %s19 = ssub.s32 %s14, 1
      %s20 = ssub.s32 %s14, 2
      %s21 = sadd.s32 %s14, 1
      %s23 = sadd.s32 %s22, 1
      %p26 = scmp.eq.s32.totalorder %s14, 2
      %p27 = scmp.ne.s32.totalorder %s22, %s24
      %p28 = scmp.eq.s32.totalorder %s14, 0
      %p29 = por %p27, %p28
      %p30 = scmp.ne.s32.totalorder %s22, %s24
      %p31 = scmp.eq.s32.totalorder %s19, 2
      %p32 = por %p30, %p31
      %p33 = scmp.ne.s32.totalorder %s24, %s25
      %p34 = scmp.eq.s32.totalorder %s19, 0
      %p35 = por %p33, %p34
      %p36 = scmp.ne.s32.totalorder %s24, %s25
      %p37 = scmp.eq.s32.totalorder %s20, 2
      %p38 = por %p36, %p37
      %p40 = scmp.ne.s32.totalorder %s25, %s39
      %p41 = scmp.eq.s32.totalorder %s20, 0
      %p42 = por %p40, %p41
      %s43 = ssub.s32 %s14, %s21
      %p44 = scmp.eq.s32.totalorder %s43, 0
      %s46 = sadd.s32 %s45, 1
      %s47 = scalar_select %p44, %s45, %s46
      %p50 = pneg %p44
      %p51 = scmp.eq.s32.totalorder %s14, 2
      %p52 = por %p50, %p51
      %p53 = scmp.ne.s32.totalorder %s45, %s48
      %p54 = scmp.eq.s32.totalorder %s14, 0
      %p55 = por %p53, %p54
      %p56 = scmp.ne.s32.totalorder %s45, %s48
      %p57 = scmp.eq.s32.totalorder %s19, 2
      %p58 = por %p56, %p57
      %p59 = scmp.ne.s32.totalorder %s48, %s49
      %p60 = scmp.eq.s32.totalorder %s19, 0
      %p61 = por %p59, %p60
      %p62 = scmp.ne.s32.totalorder %s48, %s49
      %p63 = scmp.eq.s32.totalorder %s20, 2
      %p64 = por %p62, %p63
      %p66 = scmp.ne.s32.totalorder %s49, %s65
      %p67 = scmp.eq.s32.totalorder %s20, 0
      %p68 = por %p66, %p67
      %s69 = ssub.s32 %s14, %s21
      %p70 = scmp.eq.s32.totalorder %s69, 0
      %s72 = sadd.s32 %s71, 1
      %s73 = scalar_select %p70, %s71, %s72
      %p76 = pneg %p70
      %p77 = scmp.eq.s32.totalorder %s14, 2
      %p78 = por %p76, %p77
      %p79 = scmp.ne.s32.totalorder %s71, %s74
      %p80 = scmp.eq.s32.totalorder %s14, 0
      %p81 = por %p79, %p80
      %p82 = scmp.ne.s32.totalorder %s71, %s74
      %p83 = scmp.eq.s32.totalorder %s19, 2
      %p84 = por %p82, %p83
      %p85 = scmp.ne.s32.totalorder %s74, %s75
      %p86 = scmp.eq.s32.totalorder %s19, 0
      %p87 = por %p85, %p86
      %p88 = scmp.ne.s32.totalorder %s74, %s75
      %p89 = scmp.eq.s32.totalorder %s20, 2
      %p90 = por %p88, %p89
      %p92 = scmp.ne.s32.totalorder %s75, %s91
      %p93 = scmp.eq.s32.totalorder %s20, 0
      %p94 = por %p92, %p93
      %s96 = sadd.s32 %s95, 1
      %p99 = scmp.eq.s32.totalorder %s14, 2
      %p100 = scmp.ne.s32.totalorder %s95, %s97
      %p101 = scmp.eq.s32.totalorder %s14, 0
      %p102 = por %p100, %p101
      %p103 = scmp.ne.s32.totalorder %s95, %s97
      %p104 = scmp.eq.s32.totalorder %s19, 2
      %p105 = por %p103, %p104
      %p106 = scmp.ne.s32.totalorder %s97, %s98
      %p107 = scmp.eq.s32.totalorder %s19, 0
      %p108 = por %p106, %p107
      %p109 = scmp.ne.s32.totalorder %s97, %s98
      %p110 = scmp.eq.s32.totalorder %s20, 2
      %p111 = por %p109, %p110
      %p113 = scmp.ne.s32.totalorder %s98, %s112
      %p114 = scmp.eq.s32.totalorder %s20, 0
      %p115 = por %p113, %p114
      %p116 = scmp.le.s32.totalorder 1, %s14
      %p117 = scmp.lt.s32.totalorder %s14, 4
      %p118 = pnand %p116, %p117
      %p119 = pneg %p118
      // Predicated region
      $region9: #{tpu_custom_call.1} parent=5 // pred_check
        _
      $region10: #{tpu_custom_call.1} parent=5 // pred_check_branch
        %121 = sbr.rel (%p118) target = $region12
      $region11: #{tpu_custom_call.1} parent=5 // pred_region
        %s122 = ssub.s32 %s14, 1
        // Predicated region
        $region13: #{tpu_custom_call.1} parent=11 // pred_check
          %p123 = pneg %p35
        $region14: #{tpu_custom_call.1} parent=11 // pred_check_branch
          %125 = sbr.rel (%p123) target = $region16
        $region15: #{tpu_custom_call.1} parent=11 // pred_region
          %127 = vsyncadd [#allocation3], 0
          %s129 = sshll.u32 %s0, 4
          %s130 = int_to_ptr.hbm [resolvable:$true] %s129
          %s131 = sshll.u32 [#allocation2], 4
          %s132 = int_to_ptr.vmem [resolvable:$true] %s131
          %134 = dma.hbm_to_vmem [thread:$0]  %s130, 64, %s132, [#allocation3]
        $region16: #{tpu_custom_call.1} parent=11 // pred_fallthru
          _
      $region12: #{tpu_custom_call.1} parent=5 // pred_fallthru
        _
      %p135 = scmp.lt.s32.totalorder %s14, 3
      // Predicated region
      $region17: #{tpu_custom_call.1} parent=5 // pred_check
        %p136 = pneg %p135
      $region18: #{tpu_custom_call.1} parent=5 // pred_check_branch
        %138 = sbr.rel (%p136) target = $region20
      $region19: #{tpu_custom_call.1} parent=5 // pred_region
        // Predicated region
        $region21: #{tpu_custom_call.1} parent=19 // pred_check
          %p139 = pneg %p55
        $region22: #{tpu_custom_call.1} parent=19 // pred_check_branch
          %141 = sbr.rel (%p139) target = $region24
        $region23: #{tpu_custom_call.1} parent=19 // pred_region
          %s142 = sand.u32 %s14, 1
          %s143 = scalar_lea.sflag [#allocation6], %s142
          %s144 = sand.u32 %s45, 1
          %s145 = smul.addr %s144, 64
          %s146 = scalar_lea.vmem [#allocation5], %s145
          %148 = vsyncadd %s143, 0
          %s149 = smul.addr %s14, 16
          %s150 = smul.addr %s149, 4
          %s151 = scalar_lea.hbm %s1, %s150
          %s152 = sshll.u32 %s151, 4
          %s153 = int_to_ptr.hbm [resolvable:$true] %s152
          %s154 = sshll.u32 %s146, 4
          %s155 = int_to_ptr.vmem [resolvable:$true] %s154
          %160 = dma.hbm_to_vmem [thread:$0]  %s153, 1024, %s155, %s143, 64, 64, 4
        $region24: #{tpu_custom_call.1} parent=19 // pred_fallthru
          _
        // Predicated region
        $region25: #{tpu_custom_call.1} parent=19 // pred_check
          %p161 = pneg %p81
        $region26: #{tpu_custom_call.1} parent=19 // pred_check_branch
          %163 = sbr.rel (%p161) target = $region28
        $region27: #{tpu_custom_call.1} parent=19 // pred_region
          %s164 = sand.u32 %s14, 1
          %s165 = scalar_lea.sflag [#allocation6], %s164
          %s166 = sand.u32 %s71, 1
          %s167 = smul.addr %s166, 4
          %s168 = scalar_lea.vmem [#allocation7], %s167
          %170 = vsyncadd %s165, 0
          %s171 = smul.addr %s14, 4
          %s172 = scalar_lea.hbm %s2, %s171
          %s174 = sshll.u32 %s172, 4
          %s175 = int_to_ptr.hbm [resolvable:$true] %s174
          %s176 = sshll.u32 %s168, 4
          %s177 = int_to_ptr.vmem [resolvable:$true] %s176
          %179 = dma.hbm_to_vmem [thread:$0]  %s175, 64, %s177, %s165
        $region28: #{tpu_custom_call.1} parent=19 // pred_fallthru
          _
      $region20: #{tpu_custom_call.1} parent=5 // pred_fallthru
        _
      %p180 = scmp.le.s32.totalorder 1, %s14
      %p181 = scmp.lt.s32.totalorder %s14, 4
      %p182 = pnand %p180, %p181
      %p183 = pneg %p182
      // Predicated region
      $region29: #{tpu_custom_call.1} parent=5 // pred_check
        _
      $region30: #{tpu_custom_call.1} parent=5 // pred_check_branch
        %185 = sbr.rel (%p182) target = $region32
      $region31: #{tpu_custom_call.1} parent=5 // pred_region
        %s186 = ssub.s32 %s14, 1
        // Predicated region
        $region33: #{tpu_custom_call.1} parent=31 // pred_check
          %p187 = pneg %p35
        $region34: #{tpu_custom_call.1} parent=31 // pred_check_branch
          %189 = sbr.rel (%p187) target = $region36
        $region35: #{tpu_custom_call.1} parent=31 // pred_region
          %191 = dma.done [#allocation3], 64
        $region36: #{tpu_custom_call.1} parent=31 // pred_fallthru
          _
        %s192 = sand.u32 %s19, 1
        %s193 = scalar_lea.sflag [#allocation6], %s192
        %s194 = sand.u32 %s48, 1
        %s195 = smul.addr %s194, 64
        %s196 = scalar_lea.vmem [#allocation5], %s195
        // Predicated region
        $region37: #{tpu_custom_call.1} parent=31 // pred_check
          %p197 = pneg %p61
        $region38: #{tpu_custom_call.1} parent=31 // pred_check_branch
          %199 = sbr.rel (%p197) target = $region40
        $region39: #{tpu_custom_call.1} parent=31 // pred_region
          %201 = dma.done %s193, 1024
        $region40: #{tpu_custom_call.1} parent=31 // pred_fallthru
          _
        %s202 = sand.u32 %s19, 1
        %s203 = scalar_lea.sflag [#allocation6], %s202
        %s204 = sand.u32 %s74, 1
        %s205 = smul.addr %s204, 4
        %s206 = scalar_lea.vmem [#allocation7], %s205
        // Predicated region
        $region41: #{tpu_custom_call.1} parent=31 // pred_check
          %p207 = pneg %p87
        $region42: #{tpu_custom_call.1} parent=31 // pred_check_branch
          %209 = sbr.rel (%p207) target = $region44
        $region43: #{tpu_custom_call.1} parent=31 // pred_region
          %211 = dma.done %s203, 64
        $region44: #{tpu_custom_call.1} parent=31 // pred_fallthru
          _
        %p212 = pneg %p35
        %p213 = pneg %p32
        %s214 = sand.u32 %s19, 1
        %s215 = scalar_lea.sflag [#allocation6], %s214
        %s216 = sand.u32 %s48, 1
        %s217 = smul.addr %s216, 64
        %s218 = scalar_lea.vmem [#allocation5], %s217
        %p219 = pneg %p61
        %p220 = pneg %p58
        %s221 = sand.u32 %s19, 1
        %s222 = scalar_lea.sflag [#allocation6], %s221
        %s223 = sand.u32 %s74, 1
        %s224 = smul.addr %s223, 4
        %s225 = scalar_lea.vmem [#allocation7], %s224
        %p226 = pneg %p87
        %p227 = pneg %p84
        %p228 = pneg %p108
        %p229 = pneg %p105
        %v230 = vld [vmem:[%s196] sm:$0xf]
        %v231 = vld [vmem:[%s196 + $0x4] sm:$0xf]
        %v232 = vld [vmem:[%s196 + $0x8] sm:$0xf]
        %v233 = vld [vmem:[%s196 + $0xc] sm:$0xf]
        %v234 = vld [vmem:[%s196 + $0x10] sm:$0xf]
        %v235 = vld [vmem:[%s196 + $0x14] sm:$0xf]
        %v236 = vld [vmem:[%s196 + $0x18] sm:$0xf]
        %v237 = vld [vmem:[%s196 + $0x1c] sm:$0xf]
        %v238 = vld [vmem:[%s196 + $0x20] sm:$0xf]
        %v239 = vld [vmem:[%s196 + $0x24] sm:$0xf]
        %v240 = vld [vmem:[%s196 + $0x28] sm:$0xf]
        %v241 = vld [vmem:[%s196 + $0x2c] sm:$0xf]
        %v242 = vld [vmem:[%s196 + $0x30] sm:$0xf]
        %v243 = vld [vmem:[%s196 + $0x34] sm:$0xf]
        %v244 = vld [vmem:[%s196 + $0x38] sm:$0xf]
        %v245 = vld [vmem:[%s196 + $0x3c] sm:$0xf]
        %v246 = vld [vmem:[%s206] sm:$0x1]
        %p247 = scmp.eq.s32.totalorder %s19, 0
        // Predicated region
        $region45: #{tpu_custom_call.1} parent=31 // pred_check
          %p248 = pneg %p247
        $region46: #{tpu_custom_call.1} parent=31 // pred_check_branch
          %250 = sbr.rel (%p248) target = $region48
        $region47: #{tpu_custom_call.1} parent=31 // pred_region
          %v251 = vld [vmem:[#allocation2] sm:$0xf]
          %v252 = vperm.slane %v246, 0
          %v269 = vunpack.c.l.b16 %v230
          %v270 = vunpack.c.l.b16 %v231
          %v271 = vunpack.c.l.b16 %v232
          %v272 = vunpack.c.l.b16 %v233
          %v273 = vunpack.c.l.b16 %v234
          %v274 = vunpack.c.l.b16 %v235
          %v275 = vunpack.c.l.b16 %v236
          %v276 = vunpack.c.l.b16 %v237
          %v277 = vunpack.c.l.b16 %v238
          %v278 = vunpack.c.l.b16 %v239
          %v279 = vunpack.c.l.b16 %v240
          %v280 = vunpack.c.l.b16 %v241
          %v281 = vunpack.c.l.b16 %v242
          %v282 = vunpack.c.l.b16 %v243
          %v283 = vunpack.c.l.b16 %v244
          %v284 = vunpack.c.l.b16 %v245
          %v285 = vpack.c.b16 %v270, %v269
          %v286 = vpack.c.b16 %v272, %v271
          %v287 = vpack.c.b16 %v274, %v273
          %v288 = vpack.c.b16 %v276, %v275
          %v289 = vpack.c.b16 %v278, %v277
          %v290 = vpack.c.b16 %v280, %v279
          %v291 = vpack.c.b16 %v282, %v281
          %v292 = vpack.c.b16 %v284, %v283
          %301 = vmatpush.bf16.msra.mxu0 %v292
          %302 = vmatpush.bf16.msra.mxu0 %v291
          %303 = vmatpush.bf16.msra.mxu0 %v290
          %304 = vmatpush.bf16.msra.mxu0 %v289
          %305 = vmatpush.bf16.msra.mxu0 %v288
          %306 = vmatpush.bf16.msra.mxu0 %v287
          %307 = vmatpush.bf16.msra.mxu0 %v286
          %308 = vmatpush.bf16.msra.mxu0 %v285
          %309 = vmatmul.bf16.gmra.mxu0 %v251
          %v310 = vpop.f32.mrf.mxu0
          %v311 = vadd.f32 %v252, %v310
          %v312 = vpop.f32.mrf.mxu0
          %313 = vdwg.mxu0
          %314 = vst [vmem:[#allocation8] sm:$0xff] %v311
        $region48: #{tpu_custom_call.1} parent=31 // pred_fallthru
          _
        %p315 = scmp.gt.s32.totalorder %s19, 0
        // Predicated region
        $region49: #{tpu_custom_call.1} parent=31 // pred_check
          %p316 = pneg %p315
        $region50: #{tpu_custom_call.1} parent=31 // pred_check_branch
          %318 = sbr.rel (%p316) target = $region52
        $region51: #{tpu_custom_call.1} parent=31 // pred_region
          %v319 = vld [vmem:[#allocation8] sm:$0xff]
          %v320 = vld [vmem:[%s206 + $0x1] sm:$0x1]
          %v321 = vld [vmem:[%s206 + $0x2] sm:$0x1]
          %v322 = vrot.slane %v319, 4
          %v323 = vadd.f32 %v319, %v322
          %v324 = vrot.slane %v323, 2
          %v325 = vadd.f32 %v323, %v324
          %v326 = vrot.slane %v325, 1
          %v327 = vadd.f32 %v325, %v326
          %v328 = vmul.f32 %v327, 0.125
          %v329 = vsub.f32 %v319, %v328
          %v330 = vmul.f32 %v329, %v329
          %v331 = vrot.slane %v330, 4
          %v332 = vadd.f32 %v330, %v331
          %v333 = vrot.slane %v332, 2
          %v334 = vadd.f32 %v332, %v333
          %v335 = vrot.slane %v334, 1
          %v336 = vadd.f32 %v334, %v335
          %v337 = vmul.f32 %v336, 0.125
          %v338 = vadd.f32 %v337, 1e-05
          %v339 = vrsqrt.pop %v338
          %v340 = vmul.f32 %v339, %v338
          %v341 = vmul.f32 %v340, %v339
          %v342 = vmul.f32 0.5, %v341
          %v343 = vsub.f32 1.5, %v342
          %v344 = vmul.f32 %v339, %v343
          %vm345 = vweird.f32 %v338
          %vm346 = vweird.f32 %v339
          %vm347 = vmor %vm345, %vm346
          %v348 = vsel %vm347, %v339, %v344
          %v349 = vmul.f32 %v320, %v348
          %v350 = vperm.slane %v349, 0
          %v351 = vmul.f32 %v329, %v350
          %v352 = vperm.slane %v321, 0
          %v353 = vadd.f32 %v351, %v352
          %v354 = vmax.f32 %v353, 0.0
          %v355 = vpack.c.bf16 %v354, %v354
          %v356 = vperm.slane %v246, 0
          %v373 = vunpack.c.l.b16 %v230
          %v374 = vunpack.c.l.b16 %v231
          %v375 = vunpack.c.l.b16 %v232
          %v376 = vunpack.c.l.b16 %v233
          %v377 = vunpack.c.l.b16 %v234
          %v378 = vunpack.c.l.b16 %v235
          %v379 = vunpack.c.l.b16 %v236
          %v380 = vunpack.c.l.b16 %v237
          %v381 = vunpack.c.l.b16 %v238
          %v382 = vunpack.c.l.b16 %v239
          %v383 = vunpack.c.l.b16 %v240
          %v384 = vunpack.c.l.b16 %v241
          %v385 = vunpack.c.l.b16 %v242
          %v386 = vunpack.c.l.b16 %v243
          %v387 = vunpack.c.l.b16 %v244
          %v388 = vunpack.c.l.b16 %v245
          %v389 = vpack.c.b16 %v374, %v373
          %v390 = vpack.c.b16 %v376, %v375
          %v391 = vpack.c.b16 %v378, %v377
          %v392 = vpack.c.b16 %v380, %v379
          %v393 = vpack.c.b16 %v382, %v381
          %v394 = vpack.c.b16 %v384, %v383
          %v395 = vpack.c.b16 %v386, %v385
          %v396 = vpack.c.b16 %v388, %v387
          %405 = vmatpush.bf16.msra.mxu0 %v396
          %406 = vmatpush.bf16.msra.mxu0 %v395
          %407 = vmatpush.bf16.msra.mxu0 %v394
          %408 = vmatpush.bf16.msra.mxu0 %v393
          %409 = vmatpush.bf16.msra.mxu0 %v392
          %410 = vmatpush.bf16.msra.mxu0 %v391
          %411 = vmatpush.bf16.msra.mxu0 %v390
          %412 = vmatpush.bf16.msra.mxu0 %v389
          %413 = vmatmul.bf16.gmra.mxu0 %v355
          %v414 = vpop.f32.mrf.mxu0
          %v415 = vadd.f32 %v356, %v414
          %v416 = vpop.f32.mrf.mxu0
          %417 = vdwg.mxu0
          %418 = vst [vmem:[#allocation8] sm:$0xff] %v415
        $region52: #{tpu_custom_call.1} parent=31 // pred_fallthru
          _
        // Predicated region
        $region53: #{tpu_custom_call.1} parent=31 // pred_check
          %p419 = pneg %p105
        $region54: #{tpu_custom_call.1} parent=31 // pred_check_branch
          %421 = sbr.rel (%p419) target = $region56
        $region55: #{tpu_custom_call.1} parent=31 // pred_region
          %423 = vsyncadd [#allocation4], 0
          %s425 = sshll.u32 [#allocation8], 4
          %s426 = int_to_ptr.vmem [resolvable:$true] %s425
          %s427 = sshll.u32 %s3, 4
          %s428 = int_to_ptr.hbm [resolvable:$true] %s427
          %430 = dma.vmem_to_hbm [thread:$0]  %s426, 128, %s428, [#allocation4]
        $region56: #{tpu_custom_call.1} parent=31 // pred_fallthru
          _
        // Predicated region
        $region57: #{tpu_custom_call.1} parent=31 // pred_check
          %p431 = pneg %p105
        $region58: #{tpu_custom_call.1} parent=31 // pred_check_branch
          %433 = sbr.rel (%p431) target = $region60
        $region59: #{tpu_custom_call.1} parent=31 // pred_region
          %435 = dma.done [#allocation4], 128
        $region60: #{tpu_custom_call.1} parent=31 // pred_fallthru
          _
      $region32: #{tpu_custom_call.1} parent=5 // pred_fallthru
        _
      %p436 = scmp.le.s32.totalorder 2, %s14
      // Predicated region
      $region61: #{tpu_custom_call.1} parent=5 // pred_check
        %p437 = pneg %p436
      $region62: #{tpu_custom_call.1} parent=5 // pred_check_branch
        %439 = sbr.rel (%p437) target = $region64
      $region63: #{tpu_custom_call.1} parent=5 // pred_region
        %s440 = ssub.s32 %s14, 2
      $region64: #{tpu_custom_call.1} parent=5 // pred_fallthru
        _
    $region6: #{tpu_custom_call.1} parent=1 // loop_footer
      %s18 = sadd.s32 1, %s14
    $region7: #{tpu_custom_call.1} parent=1 // loop_footer_branch
      %13 = sbr.rel target = $region3
    $region8: #{tpu_custom_call.1} parent=1 // loop_exit
      _
    %441 = vsyncpa [#allocation3], 1
    %s442 = scalar_lea.sflag [#allocation3], 1
    %443 = vsyncpa %s442, 1
    %444 = vsyncpa [#allocation6], 1
    %s445 = scalar_lea.sflag [#allocation6], 1
    %446 = vsyncpa %s445, 1
    %447 = vsyncpa [#allocation4], 1
    %s448 = scalar_lea.sflag [#allocation4], 1
    %449 = vsyncpa %s448, 1

</llo_original>
